<compile_context>
chip_gen: v5e
topology: v5e:2x2
jax: 0.10.0
libtpu: 0.0.40
codegen_flags: <defaults>
</compile_context>

<pallas_src>
import jax
import jax.numpy as jnp
from jax.experimental import pallas as pl
from jax.experimental.pallas import tpu as pltpu

_SHIFTS = ((0, 0), (0, 1), (1, 0), (1, 1))


def _stem_kernel(x_ref, w1_ref, w2_ref, s1_ref, b1_ref, s2_ref, b2_ref,
                 o_ref, mid_ref):
    nt, u, v, k1 = x_ref.shape          # u = OH+1, v = OW+1, k1 = 16*C_in
    oh, ow = u - 1, v - 1               # final spatial dims (H/4, W/4)
    c4m = w1_ref.shape[2]               # 4 * C_mid
    co = w2_ref.shape[2]                # C_out
    rows = nt * oh * ow

    # ---- conv1 (3x3, stride 2, pad 1): 4 shifted MXU matmuls on the 16-phase packed
    # input.  Output column block (a*2 + b) holds the conv1 output at spatial parity
    # (row % 2, col % 2) == (a, b).
    acc1 = jnp.zeros((rows, c4m), jnp.float32)
    for d, (dh, dw) in enumerate(_SHIFTS):
        patch = x_ref[:, dh:dh + oh, dw:dw + ow, :].reshape(rows, k1)
        acc1 = acc1 + jnp.dot(patch, w1_ref[d],
                              preferred_element_type=jnp.float32)

    # Folded BN1 + ReLU.
    mid = jnp.maximum(acc1 * s1_ref[...] + b1_ref[...], 0.0)

    # Park the phase-packed intermediate in VMEM with a one-pixel zero border: this is
    # exactly conv2's (already padded) input -- no HBM round trip.
    mid_ref[...] = jnp.zeros(mid_ref.shape, jnp.float32)
    mid_ref[:, 1:u, 1:v, :] = mid.reshape(nt, oh, ow, c4m)

    # ---- conv2 (3x3, stride 2, pad 1): 4 shifted MXU matmuls on the packed
    # intermediate (stride/padding bookkeeping lives in w2_ref's layout).
    acc2 = jnp.zeros((rows, co), jnp.float32)
    for d, (dh, dw) in enumerate(_SHIFTS):
        patch = mid_ref[:, dh:dh + oh, dw:dw + ow, :].reshape(rows, c4m)
        acc2 = acc2 + jnp.dot(patch, w2_ref[d],
                              preferred_element_type=jnp.float32)

    # Folded BN2, lane-dense store.
    o_ref[...] = (acc2 * s2_ref[...] + b2_ref[...]).astype(o_ref.dtype)


def _pick_batch_tile(n, per_image_bytes, oh, ow, budget=24 << 20):
    """Largest divisor of n that fits the VMEM budget and keeps the flattened output
    row-block 8-sublane aligned (always-legal fallback: the full batch)."""
    best = n
    for cand in range(n, 0, -1):
        if n % cand:
            continue
        if cand != n and (cand * oh * ow) % 8 != 0:
            continue
        if cand * per_image_bytes <= budget:
            return cand
        best = cand
    return best


@jax.jit
def stem0_imagenet_forward(x, w1, g1, be1, m1, v1, w2, g2, be2, m2, v2):
    """Forward pass of Stem0Imagenet.

    x  : (N, C_in, H, W)      NCHW, H and W divisible by 4
    w1 : (C_mid, C_in, 3, 3)  conv1 weight (C_mid = ch_out // 2)
    w2 : (C_out, C_mid, 3, 3) conv2 weight
    g*, be*, m*, v* : BatchNorm weight / bias / running_mean / running_var.
    Returns (N, C_out, H // 4, W // 4) NCHW.
    """
    eps = 1e-5  # nn.BatchNorm2d default
    n, cin, h, w = x.shape
    cm = w1.shape[0]
    co = w2.shape[0]
    assert h % 4 == 0 and w % 4 == 0, "H and W must be divisible by 4"
    oh, ow = h // 4, w // 4
    u, v = oh + 1, ow + 1

    # Fold inference-mode BatchNorm into per-channel scale / bias.
    s1 = g1 / jnp.sqrt(v1 + eps)
    b1 = be1 - m1 * s1
    s2 = g2 / jnp.sqrt(v2 + eps)
    b2 = be2 - m2 * s2

    # ---- pack the zero-padded input into the 16-phase, lane-dense NHWC layout:
    #   x16[n, i, j, (ph*4 + pw)*C_in + c] = x_pad[n, 4*i + ph, 4*j + pw, c]
    xh = jnp.transpose(x, (0, 2, 3, 1))
    xp = jnp.pad(xh, ((0, 0), (1, 3), (1, 3), (0, 0)))
    x16 = (xp.reshape(n, u, 4, v, 4, cin)
             .transpose(0, 1, 3, 2, 4, 5)
             .reshape(n, u, v, 16 * cin))

    # ---- scatter conv1 weights into 4 shifted (16*C_in, 4*C_mid) matrices.
    w1cat = jnp.zeros((2, 2, 16 * cin, 4 * cm), w1.dtype)
    for a in range(2):
        for b in range(2):
            for kh in range(3):
                for kw in range(3):
                    qh, qw = 2 * a + kh, 2 * b + kw
                    dh, ph = qh // 4, qh % 4
                    dw, pw = qw // 4, qw % 4
                    r0 = (ph * 4 + pw) * cin
                    c0 = (a * 2 + b) * cm
                    w1cat = w1cat.at[dh, dw, r0:r0 + cin, c0:c0 + cm].set(
                        jnp.transpose(w1[:, :, kh, kw]))
    w1cat = w1cat.reshape(4, 16 * cin, 4 * cm)

    # ---- scatter conv2 weights into 4 shifted (4*C_mid, C_out) matrices.
    # Row block (a*2 + b) consumes conv1-output parity (a, b); the shift (dh, dw)
    # corresponds to kernel tap (2*dh + a - 1, 2*dw + b - 1).
    w2cat = jnp.zeros((2, 2, 4 * cm, co), w2.dtype)
    for dh in range(2):
        for dw in range(2):
            for a in range(2):
                for b in range(2):
                    kh, kw = 2 * dh + a - 1, 2 * dw + b - 1
                    if 0 <= kh <= 2 and 0 <= kw <= 2:
                        r0 = (a * 2 + b) * cm
                        w2cat = w2cat.at[dh, dw, r0:r0 + cm, :].set(
                            jnp.transpose(w2[:, :, kh, kw]))
    w2cat = w2cat.reshape(4, 4 * cm, co)

    s1t = jnp.tile(s1, 4)[None, :].astype(jnp.float32)   # matches the 4 phase blocks
    b1t = jnp.tile(b1, 4)[None, :].astype(jnp.float32)
    s2t = s2[None, :].astype(jnp.float32)
    b2t = b2[None, :].astype(jnp.float32)

    # ---- batch tile: as many images per grid step as comfortably fit in VMEM.
    itemsize = x.dtype.itemsize
    per_img = (2 * u * v * 16 * cin * itemsize          # double-buffered input block
               + u * v * 4 * cm * 4                     # VMEM scratch (f32)
               + 4 * oh * ow * (4 * cm + co) * 4)       # in-flight values + output
    nt = _pick_batch_tile(n, per_img, oh, ow)
    rows = nt * oh * ow

    out_flat = pl.pallas_call(
        _stem_kernel,
        out_shape=jax.ShapeDtypeStruct((n * oh * ow, co), x.dtype),
        grid=(n // nt,),
        in_specs=[
            pl.BlockSpec((nt, u, v, 16 * cin), lambda i: (i, 0, 0, 0)),
            pl.BlockSpec((4, 16 * cin, 4 * cm), lambda i: (0, 0, 0)),
            pl.BlockSpec((4, 4 * cm, co), lambda i: (0, 0, 0)),
            pl.BlockSpec((1, 4 * cm), lambda i: (0, 0)),
            pl.BlockSpec((1, 4 * cm), lambda i: (0, 0)),
            pl.BlockSpec((1, co), lambda i: (0, 0)),
            pl.BlockSpec((1, co), lambda i: (0, 0)),
        ],
        out_specs=pl.BlockSpec((rows, co), lambda i: (i, 0)),
        scratch_shapes=[pltpu.VMEM((nt, u, v, 4 * cm), jnp.float32)],
        compiler_params=pltpu.CompilerParams(
            dimension_semantics=("parallel",)),
    )(x16, w1cat, w2cat, s1t, b1t, s2t, b2t)

    return jnp.transpose(out_flat.reshape(n, oh, ow, co), (0, 3, 1, 2))


def _reference(x, w1, g1, be1, m1, v1, w2, g2, be2, m2, v2, eps=1e-5):
    y = jax.lax.conv_general_dilated(
        x, w1, window_strides=(2, 2), padding=((1, 1), (1, 1)),
        dimension_numbers=("NCHW", "OIHW", "NCHW"))
    y = (y - m1[None, :, None, None]) / jnp.sqrt(v1 + eps)[None, :, None, None]
    y = y * g1[None, :, None, None] + be1[None, :, None, None]
    y = jnp.maximum(y, 0.0)
    y = jax.lax.conv_general_dilated(
        y, w2, window_strides=(2, 2), padding=((1, 1), (1, 1)),
        dimension_numbers=("NCHW", "OIHW", "NCHW"))
    y = (y - m2[None, :, None, None]) / jnp.sqrt(v2 + eps)[None, :, None, None]
    y = y * g2[None, :, None, None] + be2[None, :, None, None]
    return y


if __name__ == "__main__":
    key = jax.random.PRNGKey(0)
    ks = jax.random.split(key, 11)

    # ImageNet-style stem at small test shapes: ch_in=3, ch_out=32, 16x16 input.
    N, C_IN, H, W = 2, 3, 16, 16
    CH_OUT = 32
    C_MID = CH_OUT // 2

    x = jax.random.normal(ks[0], (N, C_IN, H, W), jnp.float32)
    w1 = jax.random.normal(ks[1], (C_MID, C_IN, 3, 3), jnp.float32) * 0.2
    w2 = jax.random.normal(ks[2], (CH_OUT, C_MID, 3, 3), jnp.float32) * 0.2

    g1 = 1.0 + 0.1 * jax.random.normal(ks[3], (C_MID,), dtype=jnp.float32)
    be1 = 0.1 * jax.random.normal(ks[4], (C_MID,), dtype=jnp.float32)
    m1 = 0.1 * jax.random.normal(ks[5], (C_MID,), dtype=jnp.float32)
    v1 = jax.random.uniform(ks[6], (C_MID,), jnp.float32, 0.5, 1.5)

    g2 = 1.0 + 0.1 * jax.random.normal(ks[7], (CH_OUT,), dtype=jnp.float32)
    be2 = 0.1 * jax.random.normal(ks[8], (CH_OUT,), dtype=jnp.float32)
    m2 = 0.1 * jax.random.normal(ks[9], (CH_OUT,), dtype=jnp.float32)
    v2 = jax.random.uniform(ks[10], (CH_OUT,), jnp.float32, 0.5, 1.5)

    y = jax.block_until_ready(
        stem0_imagenet_forward(x, w1, g1, be1, m1, v1, w2, g2, be2, m2, v2))

    ref = _reference(x, w1, g1, be1, m1, v1, w2, g2, be2, m2, v2)
    assert y.shape == (N, CH_OUT, H // 4, W // 4), y.shape
    assert jnp.allclose(y, ref, atol=1e-3, rtol=1e-3), float(jnp.max(jnp.abs(y - ref)))
    print("KERNEL_OK")
</pallas_src>

<mosaic_0001>
module attributes {stable_mosaic.version = 11 : i64} {
  func.func @_stem_kernel(%arg0: i32, %arg1: memref<2x5x5x48xf32, #tpu.memory_space<vmem>>, %arg2: memref<4x48x64xf32, #tpu.memory_space<vmem>>, %arg3: memref<4x64x32xf32, #tpu.memory_space<vmem>>, %arg4: memref<1x64xf32, #tpu.memory_space<vmem>>, %arg5: memref<1x64xf32, #tpu.memory_space<vmem>>, %arg6: memref<1x32xf32, #tpu.memory_space<vmem>>, %arg7: memref<1x32xf32, #tpu.memory_space<vmem>>, %arg8: memref<32x32xf32, #tpu.memory_space<vmem>>, %arg9: memref<2x5x5x64xf32, #tpu.memory_space<vmem>>) attributes {dimension_semantics = [#tpu.dimension_semantics<parallel>], iteration_bounds = array<i64: 1>, scalar_prefetch = 0 : i64, scratch_operands = 1 : i64, tpu.core_type = #tpu.core_type<tc>, window_params = [{transform_indices = @transform_0, window_bounds = array<i64: 2, 5, 5, 48>}, {pipeline_mode = #tpu.pipeline_mode<synchronous>, transform_indices = @transform_1, window_bounds = array<i64: 4, 48, 64>}, {pipeline_mode = #tpu.pipeline_mode<synchronous>, transform_indices = @transform_2, window_bounds = array<i64: 4, 64, 32>}, {pipeline_mode = #tpu.pipeline_mode<synchronous>, transform_indices = @transform_3, window_bounds = array<i64: 1, 64>}, {pipeline_mode = #tpu.pipeline_mode<synchronous>, transform_indices = @transform_4, window_bounds = array<i64: 1, 64>}, {pipeline_mode = #tpu.pipeline_mode<synchronous>, transform_indices = @transform_5, window_bounds = array<i64: 1, 32>}, {pipeline_mode = #tpu.pipeline_mode<synchronous>, transform_indices = @transform_6, window_bounds = array<i64: 1, 32>}, {transform_indices = @transform_7, window_bounds = array<i64: 32, 32>}]} {
    %cst = arith.constant 0.000000e+00 : f32
    %0 = vector.broadcast %cst : f32 to vector<32x64xf32>
    %c0 = arith.constant 0 : index
    %c0_0 = arith.constant 0 : index
    %c0_1 = arith.constant 0 : index
    %c0_2 = arith.constant 0 : index
    %1 = vector.load %arg1[%c0, %c0_0, %c0_1, %c0_2] : memref<2x5x5x48xf32, #tpu.memory_space<vmem>>, vector<2x4x4x48xf32>
    %2 = vector.shape_cast %1 : vector<2x4x4x48xf32> to vector<32x48xf32>
    %c0_3 = arith.constant 0 : index
    %c0_4 = arith.constant 0 : index
    %c0_5 = arith.constant 0 : index
    %3 = vector.load %arg2[%c0_3, %c0_4, %c0_5] : memref<4x48x64xf32, #tpu.memory_space<vmem>>, vector<1x48x64xf32>
    %4 = vector.shape_cast %3 : vector<1x48x64xf32> to vector<48x64xf32>
    %cst_6 = arith.constant dense<0.000000e+00> : vector<32x64xf32>
    %5 = tpu.matmul %2, %4, %cst_6 {dimension_numbers = #tpu.dot_dimension_numbers<[1], [0], [0], [1], [0, 0, 1, 1], [], []>} : vector<32x48xf32>, vector<48x64xf32>, vector<32x64xf32> -> vector<32x64xf32>
    %6 = arith.addf %0, %5 : vector<32x64xf32>
    %c0_7 = arith.constant 0 : index
    %c0_8 = arith.constant 0 : index
    %c1 = arith.constant 1 : index
    %c0_9 = arith.constant 0 : index
    %7 = vector.load %arg1[%c0_7, %c0_8, %c1, %c0_9] : memref<2x5x5x48xf32, #tpu.memory_space<vmem>>, vector<2x4x4x48xf32>
    %8 = vector.shape_cast %7 : vector<2x4x4x48xf32> to vector<32x48xf32>
    %c1_10 = arith.constant 1 : index
    %c0_11 = arith.constant 0 : index
    %c0_12 = arith.constant 0 : index
    %9 = vector.load %arg2[%c1_10, %c0_11, %c0_12] : memref<4x48x64xf32, #tpu.memory_space<vmem>>, vector<1x48x64xf32>
    %10 = vector.shape_cast %9 : vector<1x48x64xf32> to vector<48x64xf32>
    %cst_13 = arith.constant dense<0.000000e+00> : vector<32x64xf32>
    %11 = tpu.matmul %8, %10, %cst_13 {dimension_numbers = #tpu.dot_dimension_numbers<[1], [0], [0], [1], [0, 0, 1, 1], [], []>} : vector<32x48xf32>, vector<48x64xf32>, vector<32x64xf32> -> vector<32x64xf32>
    %12 = arith.addf %6, %11 : vector<32x64xf32>
    %c0_14 = arith.constant 0 : index
    %c1_15 = arith.constant 1 : index
    %c0_16 = arith.constant 0 : index
    %c0_17 = arith.constant 0 : index
    %13 = vector.load %arg1[%c0_14, %c1_15, %c0_16, %c0_17] : memref<2x5x5x48xf32, #tpu.memory_space<vmem>>, vector<2x4x4x48xf32>
    %14 = vector.shape_cast %13 : vector<2x4x4x48xf32> to vector<32x48xf32>
    %c2 = arith.constant 2 : index
    %c0_18 = arith.constant 0 : index
    %c0_19 = arith.constant 0 : index
    %15 = vector.load %arg2[%c2, %c0_18, %c0_19] : memref<4x48x64xf32, #tpu.memory_space<vmem>>, vector<1x48x64xf32>
    %16 = vector.shape_cast %15 : vector<1x48x64xf32> to vector<48x64xf32>
    %cst_20 = arith.constant dense<0.000000e+00> : vector<32x64xf32>
    %17 = tpu.matmul %14, %16, %cst_20 {dimension_numbers = #tpu.dot_dimension_numbers<[1], [0], [0], [1], [0, 0, 1, 1], [], []>} : vector<32x48xf32>, vector<48x64xf32>, vector<32x64xf32> -> vector<32x64xf32>
    %18 = arith.addf %12, %17 : vector<32x64xf32>
    %c0_21 = arith.constant 0 : index
    %c1_22 = arith.constant 1 : index
    %c1_23 = arith.constant 1 : index
    %c0_24 = arith.constant 0 : index
    %19 = vector.load %arg1[%c0_21, %c1_22, %c1_23, %c0_24] : memref<2x5x5x48xf32, #tpu.memory_space<vmem>>, vector<2x4x4x48xf32>
    %20 = vector.shape_cast %19 : vector<2x4x4x48xf32> to vector<32x48xf32>
    %c3 = arith.constant 3 : index
    %c0_25 = arith.constant 0 : index
    %c0_26 = arith.constant 0 : index
    %21 = vector.load %arg2[%c3, %c0_25, %c0_26] : memref<4x48x64xf32, #tpu.memory_space<vmem>>, vector<1x48x64xf32>
    %22 = vector.shape_cast %21 : vector<1x48x64xf32> to vector<48x64xf32>
    %cst_27 = arith.constant dense<0.000000e+00> : vector<32x64xf32>
    %23 = tpu.matmul %20, %22, %cst_27 {dimension_numbers = #tpu.dot_dimension_numbers<[1], [0], [0], [1], [0, 0, 1, 1], [], []>} : vector<32x48xf32>, vector<48x64xf32>, vector<32x64xf32> -> vector<32x64xf32>
    %24 = arith.addf %18, %23 : vector<32x64xf32>
    %c0_28 = arith.constant 0 : index
    %c0_29 = arith.constant 0 : index
    %25 = vector.load %arg4[%c0_28, %c0_29] : memref<1x64xf32, #tpu.memory_space<vmem>>, vector<1x64xf32>
    %26 = vector.broadcast %25 : vector<1x64xf32> to vector<32x64xf32>
    %27 = arith.mulf %24, %26 : vector<32x64xf32>
    %c0_30 = arith.constant 0 : index
    %c0_31 = arith.constant 0 : index
    %28 = vector.load %arg5[%c0_30, %c0_31] : memref<1x64xf32, #tpu.memory_space<vmem>>, vector<1x64xf32>
    %29 = vector.broadcast %28 : vector<1x64xf32> to vector<32x64xf32>
    %30 = arith.addf %27, %29 : vector<32x64xf32>
    %cst_32 = arith.constant 0.000000e+00 : f32
    %31 = vector.broadcast %cst_32 : f32 to vector<32x64xf32>
    %32 = arith.maximumf %30, %31 : vector<32x64xf32>
    %cst_33 = arith.constant 0.000000e+00 : f32
    %33 = vector.broadcast %cst_33 : f32 to vector<2x5x5x64xf32>
    %c0_34 = arith.constant 0 : index
    %c0_35 = arith.constant 0 : index
    %c0_36 = arith.constant 0 : index
    %c0_37 = arith.constant 0 : index
    %34 = vector.load %arg9[%c0_34, %c0_35, %c0_36, %c0_37] : memref<2x5x5x64xf32, #tpu.memory_space<vmem>>, vector<2x5x5x64xf32>
    tpu.vector_store %arg9[%c0_34, %c0_35, %c0_36, %c0_37], %33 {strides = array<i32>} : memref<2x5x5x64xf32, #tpu.memory_space<vmem>>, vector<2x5x5x64xf32>,
    %35 = vector.shape_cast %32 : vector<32x64xf32> to vector<2x4x4x64xf32>
    %c0_38 = arith.constant 0 : index
    %c1_39 = arith.constant 1 : index
    %c1_40 = arith.constant 1 : index
    %c0_41 = arith.constant 0 : index
    %36 = vector.load %arg9[%c0_38, %c1_39, %c1_40, %c0_41] : memref<2x5x5x64xf32, #tpu.memory_space<vmem>>, vector<2x4x4x64xf32>
    tpu.vector_store %arg9[%c0_38, %c1_39, %c1_40, %c0_41], %35 {strides = array<i32>} : memref<2x5x5x64xf32, #tpu.memory_space<vmem>>, vector<2x4x4x64xf32>,
    %cst_42 = arith.constant 0.000000e+00 : f32
    %37 = vector.broadcast %cst_42 : f32 to vector<32x32xf32>
    %c0_43 = arith.constant 0 : index
    %c0_44 = arith.constant 0 : index
    %c0_45 = arith.constant 0 : index
    %c0_46 = arith.constant 0 : index
    %38 = vector.load %arg9[%c0_43, %c0_44, %c0_45, %c0_46] : memref<2x5x5x64xf32, #tpu.memory_space<vmem>>, vector<2x4x4x64xf32>
    %39 = vector.shape_cast %38 : vector<2x4x4x64xf32> to vector<32x64xf32>
    %c0_47 = arith.constant 0 : index
    %c0_48 = arith.constant 0 : index
    %c0_49 = arith.constant 0 : index
    %40 = vector.load %arg3[%c0_47, %c0_48, %c0_49] : memref<4x64x32xf32, #tpu.memory_space<vmem>>, vector<1x64x32xf32>
    %41 = vector.shape_cast %40 : vector<1x64x32xf32> to vector<64x32xf32>
    %cst_50 = arith.constant dense<0.000000e+00> : vector<32x32xf32>
    %42 = tpu.matmul %39, %41, %cst_50 {dimension_numbers = #tpu.dot_dimension_numbers<[1], [0], [0], [1], [0, 0, 1, 1], [], []>} : vector<32x64xf32>, vector<64x32xf32>, vector<32x32xf32> -> vector<32x32xf32>
    %43 = arith.addf %37, %42 : vector<32x32xf32>
    %c0_51 = arith.constant 0 : index
    %c0_52 = arith.constant 0 : index
    %c1_53 = arith.constant 1 : index
    %c0_54 = arith.constant 0 : index
    %44 = vector.load %arg9[%c0_51, %c0_52, %c1_53, %c0_54] : memref<2x5x5x64xf32, #tpu.memory_space<vmem>>, vector<2x4x4x64xf32>
    %45 = vector.shape_cast %44 : vector<2x4x4x64xf32> to vector<32x64xf32>
    %c1_55 = arith.constant 1 : index
    %c0_56 = arith.constant 0 : index
    %c0_57 = arith.constant 0 : index
    %46 = vector.load %arg3[%c1_55, %c0_56, %c0_57] : memref<4x64x32xf32, #tpu.memory_space<vmem>>, vector<1x64x32xf32>
    %47 = vector.shape_cast %46 : vector<1x64x32xf32> to vector<64x32xf32>
    %cst_58 = arith.constant dense<0.000000e+00> : vector<32x32xf32>
    %48 = tpu.matmul %45, %47, %cst_58 {dimension_numbers = #tpu.dot_dimension_numbers<[1], [0], [0], [1], [0, 0, 1, 1], [], []>} : vector<32x64xf32>, vector<64x32xf32>, vector<32x32xf32> -> vector<32x32xf32>
    %49 = arith.addf %43, %48 : vector<32x32xf32>
    %c0_59 = arith.constant 0 : index
    %c1_60 = arith.constant 1 : index
    %c0_61 = arith.constant 0 : index
    %c0_62 = arith.constant 0 : index
    %50 = vector.load %arg9[%c0_59, %c1_60, %c0_61, %c0_62] : memref<2x5x5x64xf32, #tpu.memory_space<vmem>>, vector<2x4x4x64xf32>
    %51 = vector.shape_cast %50 : vector<2x4x4x64xf32> to vector<32x64xf32>
    %c2_63 = arith.constant 2 : index
    %c0_64 = arith.constant 0 : index
    %c0_65 = arith.constant 0 : index
    %52 = vector.load %arg3[%c2_63, %c0_64, %c0_65] : memref<4x64x32xf32, #tpu.memory_space<vmem>>, vector<1x64x32xf32>
    %53 = vector.shape_cast %52 : vector<1x64x32xf32> to vector<64x32xf32>
    %cst_66 = arith.constant dense<0.000000e+00> : vector<32x32xf32>
    %54 = tpu.matmul %51, %53, %cst_66 {dimension_numbers = #tpu.dot_dimension_numbers<[1], [0], [0], [1], [0, 0, 1, 1], [], []>} : vector<32x64xf32>, vector<64x32xf32>, vector<32x32xf32> -> vector<32x32xf32>
    %55 = arith.addf %49, %54 : vector<32x32xf32>
    %c0_67 = arith.constant 0 : index
    %c1_68 = arith.constant 1 : index
    %c1_69 = arith.constant 1 : index
    %c0_70 = arith.constant 0 : index
    %56 = vector.load %arg9[%c0_67, %c1_68, %c1_69, %c0_70] : memref<2x5x5x64xf32, #tpu.memory_space<vmem>>, vector<2x4x4x64xf32>
    %57 = vector.shape_cast %56 : vector<2x4x4x64xf32> to vector<32x64xf32>
    %c3_71 = arith.constant 3 : index
    %c0_72 = arith.constant 0 : index
    %c0_73 = arith.constant 0 : index
    %58 = vector.load %arg3[%c3_71, %c0_72, %c0_73] : memref<4x64x32xf32, #tpu.memory_space<vmem>>, vector<1x64x32xf32>
    %59 = vector.shape_cast %58 : vector<1x64x32xf32> to vector<64x32xf32>
    %cst_74 = arith.constant dense<0.000000e+00> : vector<32x32xf32>
    %60 = tpu.matmul %57, %59, %cst_74 {dimension_numbers = #tpu.dot_dimension_numbers<[1], [0], [0], [1], [0, 0, 1, 1], [], []>} : vector<32x64xf32>, vector<64x32xf32>, vector<32x32xf32> -> vector<32x32xf32>
    %61 = arith.addf %55, %60 : vector<32x32xf32>
    %c0_75 = arith.constant 0 : index
    %c0_76 = arith.constant 0 : index
    %62 = vector.load %arg6[%c0_75, %c0_76] : memref<1x32xf32, #tpu.memory_space<vmem>>, vector<1x32xf32>
    %63 = vector.broadcast %62 : vector<1x32xf32> to vector<32x32xf32>
    %64 = arith.mulf %61, %63 : vector<32x32xf32>
    %c0_77 = arith.constant 0 : index
    %c0_78 = arith.constant 0 : index
    %65 = vector.load %arg7[%c0_77, %c0_78] : memref<1x32xf32, #tpu.memory_space<vmem>>, vector<1x32xf32>
    %66 = vector.broadcast %65 : vector<1x32xf32> to vector<32x32xf32>
    %67 = arith.addf %64, %66 : vector<32x32xf32>
    %c0_79 = arith.constant 0 : index
    %c0_80 = arith.constant 0 : index
    %68 = vector.load %arg8[%c0_79, %c0_80] : memref<32x32xf32, #tpu.memory_space<vmem>>, vector<32x32xf32>
    tpu.vector_store %arg8[%c0_79, %c0_80], %67 {strides = array<i32>} : memref<32x32xf32, #tpu.memory_space<vmem>>, vector<32x32xf32>,
    return
  }
  func.func @transform_0(%arg0: i32) -> (i32, i32, i32, i32) {
    %c0_i32 = arith.constant 0 : i32
    %c0_i32_0 = arith.constant 0 : i32
    %c0_i32_1 = arith.constant 0 : i32
    %c0_i32_2 = arith.constant 0 : i32
    return %arg0, %c0_i32, %c0_i32_0, %c0_i32_1 : i32, i32, i32, i32
  }
  func.func @transform_1(%arg0: i32) -> (i32, i32, i32) {
    %c0_i32 = arith.constant 0 : i32
    %c0_i32_0 = arith.constant 0 : i32
    %c0_i32_1 = arith.constant 0 : i32
    %c0_i32_2 = arith.constant 0 : i32
    return %c0_i32, %c0_i32_0, %c0_i32_1 : i32, i32, i32
  }
  func.func @transform_2(%arg0: i32) -> (i32, i32, i32) {
    %c0_i32 = arith.constant 0 : i32
    %c0_i32_0 = arith.constant 0 : i32
    %c0_i32_1 = arith.constant 0 : i32
    %c0_i32_2 = arith.constant 0 : i32
    return %c0_i32, %c0_i32_0, %c0_i32_1 : i32, i32, i32
  }
  func.func @transform_3(%arg0: i32) -> (i32, i32) {
    %c0_i32 = arith.constant 0 : i32
    %c0_i32_0 = arith.constant 0 : i32
    %c0_i32_1 = arith.constant 0 : i32
    return %c0_i32, %c0_i32_0 : i32, i32
  }
  func.func @transform_4(%arg0: i32) -> (i32, i32) {
    %c0_i32 = arith.constant 0 : i32
    %c0_i32_0 = arith.constant 0 : i32
    %c0_i32_1 = arith.constant 0 : i32
    return %c0_i32, %c0_i32_0 : i32, i32
  }
  func.func @transform_5(%arg0: i32) -> (i32, i32) {
    %c0_i32 = arith.constant 0 : i32
    %c0_i32_0 = arith.constant 0 : i32
    %c0_i32_1 = arith.constant 0 : i32
    return %c0_i32, %c0_i32_0 : i32, i32
  }
  func.func @transform_6(%arg0: i32) -> (i32, i32) {
    %c0_i32 = arith.constant 0 : i32
    %c0_i32_0 = arith.constant 0 : i32
    %c0_i32_1 = arith.constant 0 : i32
    return %c0_i32, %c0_i32_0 : i32, i32
  }
  func.func @transform_7(%arg0: i32) -> (i32, i32) {
    %c0_i32 = arith.constant 0 : i32
    %c0_i32_0 = arith.constant 0 : i32
    return %arg0, %c0_i32 : i32, i32
  }
}

</mosaic_0001>

<llo_original>
// kernel: tile.13
$region0: #{tile.13}
  #allocation0 [shape = 's32[1]{0}', space=sflag, size = 0x4, scoped, tag = 'scoped memory for tile.13']
  %s0 = inlined_call_operand.vmem [shape: f32[16], index: 0, kind: input, shape index: {}]
  %s1 = inlined_call_operand.vmem [shape: f32[4,16], index: 1, kind: output, shape index: {}]
  // Predicated region
  $region2: #{tile.13} parent=0 // pred_check
    _
  $region3: #{tile.13} parent=0 // pred_check_branch
    %3 = sbr.rel (0) target = $region5
  $region4: #{tile.13} parent=0 // pred_region
    _
  $region5: #{tile.13} parent=0 // pred_fallthru
    _
  %v4 = vld [vmem:[%s0] ss:$0 sm:$0xff]
  %5 = vst [vmem:[%s1] sm:$0xf] %v4

// kernel: tile.14
$region0: #{tile.14}
  %s0 = inlined_call_operand.vmem [shape: f32[4,16], index: 0, kind: input, shape index: {}]
  %s1 = inlined_call_operand.vmem [shape: f32[1,64], index: 1, kind: output, shape index: {}]
  $region1: #{tile.14} parent=0
    #allocation0 [shape = 'u8[4096]{0}', space=vmem, size = 0x1000, scoped, tag = 'scoped mem for output reshape']
    #allocation1 [shape = 'u8[4096]{0}', space=vmem, size = 0x1000, scoped, tag = 'scoped mem for input reshape']
    %s3 = ssub.s32 16, 1
    %v4 = vld [vmem:[%s0] sm:%s3]
    %5 = vst [vmem:[#allocation1] sm:%s3] %v4
    %v6 = vld [vmem:[#allocation1] sm:$0x1]
    %vm7 = vcmask 130048
    %8 = vst.msk [vmem:[#allocation0] sm:$0x1] %vm7, %v6
    %s9 = scalar_lea.vmem [#allocation1], 3
    %v10 = vld [vmem:[%s9] sm:$0x1]
    %11 = vrot.lane.b32.xlu0 %v10, 48
    %v12 = vpop.permute.xlu0 %11
    %vm13 = vcmask 523648
    %14 = vst.msk [vmem:[#allocation0] sm:$0x1] %vm13, %v12
    %s15 = scalar_lea.vmem [#allocation1], 2
    %v16 = vld [vmem:[%s15] sm:$0x1]
    %17 = vrot.lane.b32.xlu0 %v16, 32
    %v18 = vpop.permute.xlu0 %17
    %vm19 = vcmask 392448
    %20 = vst.msk [vmem:[#allocation0] sm:$0x1] %vm19, %v18
    %s21 = scalar_lea.vmem [#allocation1], 1
    %v22 = vld [vmem:[%s21] sm:$0x1]
    %23 = vrot.lane.b32.xlu0 %v22, 16
    %v24 = vpop.permute.xlu0 %23
    %vm25 = vcmask 261248
    %26 = vst.msk [vmem:[#allocation0] sm:$0x1] %vm25, %v24
    %s28 = ssub.s32 2, 1
    %v29 = vld [vmem:[#allocation0] sm:%s28]
    %s31 = ssub.s32 2, 1
    %32 = vst [vmem:[%s1] sm:%s31] %v29

// kernel: stem0_imagenet_forward.1
$region0: #{stem0_imagenet_forward.1}
  #allocation0 [shape = 'u32[]', space=smem, size = 0x4, offset = 0x4, fixed_abs, tag = 'smem constant byte address 0x4 - core index']
  #allocation1 [shape = 'u32[72,128]{1,0:T(1,128)}', space=vmem, size = 0x9000, scoped, tag = 'internal scratch']
  #allocation2 [shape = 'f32[2,5,5,64]{3,2,1,0:T(8,128)}', space=vmem, size = 0xa000, scoped, tag = 'scratch operand']
  %s0 = inlined_call_operand.vmem [shape: f32[2,5,5,48], index: 0, kind: input, shape index: {}]
  %s1 = inlined_call_operand.vmem [shape: f32[4,48,64], index: 1, kind: input, shape index: {}]
  %s2 = inlined_call_operand.vmem [shape: f32[4,64,32], index: 2, kind: input, shape index: {}]
  %s3 = inlined_call_operand.vmem [shape: f32[1,64], index: 3, kind: input, shape index: {}]
  %s4 = inlined_call_operand.vmem [shape: f32[1,64], index: 4, kind: input, shape index: {}]
  %s5 = inlined_call_operand.vmem [shape: f32[1,32], index: 5, kind: input, shape index: {}]
  %s6 = inlined_call_operand.vmem [shape: f32[1,32], index: 6, kind: input, shape index: {}]
  %s7 = inlined_call_operand.hbm [shape: f32[32,32], index: 7, kind: output, shape index: {}]
  %s8 = sld [smem:[#allocation0]]
  $region38: #{stem0_imagenet_forward.1} parent=0
    _
  %s10 = ssub.s32 1, %s8
  %s11 = scalar_select 0, %s10, %s8
  $region1: #{stem0_imagenet_forward.1} parent=0
    #allocation3 [shape = 'u8[16384]{0}', space=vmem, size = 0x4000, scoped, tag = 'output window, operand 0, single buffered']
    #allocation4 [shape = 's32[1]{0}', space=sflag, size = 0x4, scoped, tag = 'scoped memory for stem0_imagenet_forward.1']
    %12 = vsyncpa [#allocation4], 0
    // Predicated region
    $region2: #{stem0_imagenet_forward.1} parent=1 // pred_check
      _
    $region3: #{stem0_imagenet_forward.1} parent=1 // pred_check_branch
      %14 = sbr.rel (0) target = $region5
    $region4: #{stem0_imagenet_forward.1} parent=1 // pred_region
      _
    $region5: #{stem0_imagenet_forward.1} parent=1 // pred_fallthru
      _
    // Predicated region
    $region6: #{stem0_imagenet_forward.1} parent=1 // pred_check
      _
    $region7: #{stem0_imagenet_forward.1} parent=1 // pred_check_branch
      %16 = sbr.rel (0) target = $region9
    $region8: #{stem0_imagenet_forward.1} parent=1 // pred_region
      _
    $region9: #{stem0_imagenet_forward.1} parent=1 // pred_fallthru
      _
    // Predicated region
    $region10: #{stem0_imagenet_forward.1} parent=1 // pred_check
      _
    $region11: #{stem0_imagenet_forward.1} parent=1 // pred_check_branch
      %18 = sbr.rel (0) target = $region13
    $region12: #{stem0_imagenet_forward.1} parent=1 // pred_region
      _
    $region13: #{stem0_imagenet_forward.1} parent=1 // pred_fallthru
      _
    // Predicated region
    $region14: #{stem0_imagenet_forward.1} parent=1 // pred_check
      _
    $region15: #{stem0_imagenet_forward.1} parent=1 // pred_check_branch
      %20 = sbr.rel (0) target = $region17
    $region16: #{stem0_imagenet_forward.1} parent=1 // pred_region
      _
    $region17: #{stem0_imagenet_forward.1} parent=1 // pred_fallthru
      _
    // Predicated region
    $region18: #{stem0_imagenet_forward.1} parent=1 // pred_check
      _
    $region19: #{stem0_imagenet_forward.1} parent=1 // pred_check_branch
      %22 = sbr.rel (0) target = $region21
    $region20: #{stem0_imagenet_forward.1} parent=1 // pred_region
      _
    $region21: #{stem0_imagenet_forward.1} parent=1 // pred_fallthru
      _
    // Predicated region
    $region22: #{stem0_imagenet_forward.1} parent=1 // pred_check
      _
    $region23: #{stem0_imagenet_forward.1} parent=1 // pred_check_branch
      %24 = sbr.rel (0) target = $region25
    $region24: #{stem0_imagenet_forward.1} parent=1 // pred_region
      _
    $region25: #{stem0_imagenet_forward.1} parent=1 // pred_fallthru
      _
    // Predicated region
    $region26: #{stem0_imagenet_forward.1} parent=1 // pred_check
      _
    $region27: #{stem0_imagenet_forward.1} parent=1 // pred_check_branch
      %26 = sbr.rel (0) target = $region29
    $region28: #{stem0_imagenet_forward.1} parent=1 // pred_region
      _
    $region29: #{stem0_imagenet_forward.1} parent=1 // pred_fallthru
      _
    %v27 = vld [vmem:[%s0] sm:$0xf]
    %v28 = vld [vmem:[%s0 + $0x8] sm:$0xf]
    %v29 = vld [vmem:[%s0 + $0x10] sm:$0xf]
    %v30 = vld [vmem:[%s0 + $0x18] sm:$0xf]
    %v31 = vld [vmem:[%s0 + $0x28] sm:$0xf]
    %v32 = vld [vmem:[%s0 + $0x30] sm:$0xf]
    %v33 = vld [vmem:[%s0 + $0x38] sm:$0xf]
    %v34 = vld [vmem:[%s0 + $0x40] sm:$0xf]
    %v35 = vld [vmem:[%s1] sm:$0xff]
    %v36 = vld [vmem:[%s1 + $0x8] sm:$0xff]
    %v37 = vld [vmem:[%s1 + $0x10] sm:$0xff]
    %v38 = vld [vmem:[%s1 + $0x18] sm:$0xff]
    %v39 = vld [vmem:[%s1 + $0x20] sm:$0xff]
    %v40 = vld [vmem:[%s1 + $0x28] sm:$0xff]
    %v41 = vld [vmem:[%s0 + $0x1] sm:$0xf]
    %v42 = vld [vmem:[%s0 + $0x9] sm:$0xf]
    %v43 = vld [vmem:[%s0 + $0x11] sm:$0xf]
    %v44 = vld [vmem:[%s0 + $0x19] sm:$0xf]
    %v45 = vld [vmem:[%s0 + $0x29] sm:$0xf]
    %v46 = vld [vmem:[%s0 + $0x31] sm:$0xf]
    %v47 = vld [vmem:[%s0 + $0x39] sm:$0xf]
    %v48 = vld [vmem:[%s0 + $0x41] sm:$0xf]
    %s49 = scalar_lea.vmem %s1, 48
    %v50 = vld [vmem:[%s49] sm:$0xff]
    %v51 = vld [vmem:[%s49 + $0x8] sm:$0xff]
    %v52 = vld [vmem:[%s49 + $0x10] sm:$0xff]
    %v53 = vld [vmem:[%s49 + $0x18] sm:$0xff]
    %v54 = vld [vmem:[%s49 + $0x20] sm:$0xff]
    %v55 = vld [vmem:[%s49 + $0x28] sm:$0xff]
    %64 = vst [vmem:[#allocation1] ss:$2 sm:$0xff] %v41
    %s65 = scalar_lea.vmem [#allocation1], 1
    %66 = vst [vmem:[%s65] ss:$2 sm:$0xff] %v42
    %s67 = scalar_lea.vmem [#allocation1], 16
    %68 = vst [vmem:[%s67] ss:$2 sm:$0xff] %v43
    %s69 = scalar_lea.vmem [#allocation1], 17
    %70 = vst [vmem:[%s69] ss:$2 sm:$0xff] %v44
    %s71 = scalar_lea.vmem [#allocation1], 32
    %72 = vst [vmem:[%s71] ss:$2 sm:$0xff] %v45
    %s73 = scalar_lea.vmem [#allocation1], 33
    %74 = vst [vmem:[%s73] ss:$2 sm:$0xff] %v46
    %s75 = scalar_lea.vmem [#allocation1], 48
    %76 = vst [vmem:[%s75] ss:$2 sm:$0xff] %v47
    %s77 = scalar_lea.vmem [#allocation1], 49
    %78 = vst [vmem:[%s77] ss:$2 sm:$0xff] %v48
    %v79 = vld.sshfl [vmem:[#allocation1] sm:$0xff pattern:$0x75316420]
    %v80 = vld.sshfl [vmem:[#allocation1 + $0x10] sm:$0xff pattern:$0x75316420]
    %v81 = vld.sshfl [vmem:[#allocation1 + $0x20] sm:$0xff pattern:$0x75316420]
    %v82 = vld.sshfl [vmem:[#allocation1 + $0x30] sm:$0xff pattern:$0x75316420]
    %vm83 = vcmask 392192
    %v84 = vsel %vm83, %v79, 0
    %v86 = vsel %vm83, %v80, 0
    %v88 = vsel %vm83, %v81, 0
    %v90 = vsel %vm83, %v82, 0
    %92 = vmatpush.msra.mxu0 0.0
    %93 = vmatpush.msra.mxu0 0.0
    %94 = vmatpush.msra.mxu0 0.0
    %95 = vmatpush.msra.mxu0 0.0
    %96 = vmatpush.msra.mxu0 0.0
    %97 = vmatpush.msra.mxu0 0.0
    %98 = vmatpush.msra.mxu0 0.0
    %99 = vmatpush.msra.mxu0 0.0
    %100 = vmatpush.msra.mxu0 0.0
    %101 = vmatpush.msra.mxu0 0.0
    %102 = vmatpush.msra.mxu0 %v55
    %103 = vmatpush.msra.mxu0 %v54
    %104 = vmatpush.msra.mxu0 %v53
    %105 = vmatpush.msra.mxu0 %v52
    %106 = vmatpush.msra.mxu0 %v51
    %107 = vmatpush.msra.mxu0 %v50
    %108 = vmatmul.f32.gmra.mxu0 %v84
    %v109 = vpop.f32.mrf.mxu0
    %v110 = vadd.f32 0.0, %v109
    %111 = vmatmul.f32.gmra.mxu0 %v86
    %v112 = vpop.f32.mrf.mxu0
    %v113 = vadd.f32 0.0, %v112
    %114 = vmatmul.f32.gmra.mxu0 %v88
    %v115 = vpop.f32.mrf.mxu0
    %v116 = vadd.f32 0.0, %v115
    %117 = vmatmul.f32.gmra.mxu0 %v90
    %v118 = vpop.f32.mrf.mxu0
    %v119 = vadd.f32 0.0, %v118
    %120 = vdwg.mxu0
    %129 = vst [vmem:[#allocation1] ss:$2 sm:$0xff] %v27
    %s130 = scalar_lea.vmem [#allocation1], 1
    %131 = vst [vmem:[%s130] ss:$2 sm:$0xff] %v28
    %s132 = scalar_lea.vmem [#allocation1], 16
    %133 = vst [vmem:[%s132] ss:$2 sm:$0xff] %v29
    %s134 = scalar_lea.vmem [#allocation1], 17
    %135 = vst [vmem:[%s134] ss:$2 sm:$0xff] %v30
    %s136 = scalar_lea.vmem [#allocation1], 32
    %137 = vst [vmem:[%s136] ss:$2 sm:$0xff] %v31
    %s138 = scalar_lea.vmem [#allocation1], 33
    %139 = vst [vmem:[%s138] ss:$2 sm:$0xff] %v32
    %s140 = scalar_lea.vmem [#allocation1], 48
    %141 = vst [vmem:[%s140] ss:$2 sm:$0xff] %v33
    %s142 = scalar_lea.vmem [#allocation1], 49
    %143 = vst [vmem:[%s142] ss:$2 sm:$0xff] %v34
    %v144 = vld.sshfl [vmem:[#allocation1] sm:$0xff pattern:$0x75316420]
    %v145 = vld.sshfl [vmem:[#allocation1 + $0x10] sm:$0xff pattern:$0x75316420]
    %v146 = vld.sshfl [vmem:[#allocation1 + $0x20] sm:$0xff pattern:$0x75316420]
    %v147 = vld.sshfl [vmem:[#allocation1 + $0x30] sm:$0xff pattern:$0x75316420]
    %v148 = vsel %vm83, %v144, 0
    %v150 = vsel %vm83, %v145, 0
    %v152 = vsel %vm83, %v146, 0
    %v154 = vsel %vm83, %v147, 0
    %156 = vmatpush.msra.mxu0 0.0
    %157 = vmatpush.msra.mxu0 0.0
    %158 = vmatpush.msra.mxu0 0.0
    %159 = vmatpush.msra.mxu0 0.0
    %160 = vmatpush.msra.mxu0 0.0
    %161 = vmatpush.msra.mxu0 0.0
    %162 = vmatpush.msra.mxu0 0.0
    %163 = vmatpush.msra.mxu0 0.0
    %164 = vmatpush.msra.mxu0 0.0
    %165 = vmatpush.msra.mxu0 0.0
    %166 = vmatpush.msra.mxu0 %v40
    %167 = vmatpush.msra.mxu0 %v39
    %168 = vmatpush.msra.mxu0 %v38
    %169 = vmatpush.msra.mxu0 %v37
    %170 = vmatpush.msra.mxu0 %v36
    %171 = vmatpush.msra.mxu0 %v35
    %172 = vmatmul.f32.gmra.mxu0 %v148
    %v173 = vpop.f32.mrf.mxu0
    %v174 = vadd.f32 %v110, %v173
    %175 = vmatmul.f32.gmra.mxu0 %v150
    %v176 = vpop.f32.mrf.mxu0
    %v177 = vadd.f32 %v113, %v176
    %178 = vmatmul.f32.gmra.mxu0 %v152
    %v179 = vpop.f32.mrf.mxu0
    %v180 = vadd.f32 %v116, %v179
    %181 = vmatmul.f32.gmra.mxu0 %v154
    %v182 = vpop.f32.mrf.mxu0
    %v183 = vadd.f32 %v119, %v182
    %184 = vdwg.mxu0
    %s185 = scalar_lea.vmem %s0, 8
    %v186 = vld [vmem:[%s185] sm:$0xf]
    %v187 = vld [vmem:[%s185 + $0x8] sm:$0xf]
    %v188 = vld [vmem:[%s185 + $0x10] sm:$0xf]
    %v189 = vld [vmem:[%s185 + $0x18] sm:$0xf]
    %v190 = vld [vmem:[%s185 + $0x28] sm:$0xf]
    %v191 = vld [vmem:[%s185 + $0x30] sm:$0xf]
    %v192 = vld [vmem:[%s185 + $0x38] sm:$0xf]
    %v193 = vld [vmem:[%s185 + $0x40] sm:$0xf]
    %s194 = scalar_lea.vmem %s1, 96
    %v195 = vld [vmem:[%s194] sm:$0xff]
    %v196 = vld [vmem:[%s194 + $0x8] sm:$0xff]
    %v197 = vld [vmem:[%s194 + $0x10] sm:$0xff]
    %v198 = vld [vmem:[%s194 + $0x18] sm:$0xff]
    %v199 = vld [vmem:[%s194 + $0x20] sm:$0xff]
    %v200 = vld [vmem:[%s194 + $0x28] sm:$0xff]
    %209 = vst [vmem:[#allocation1] ss:$2 sm:$0xff] %v186
    %s210 = scalar_lea.vmem [#allocation1], 1
    %211 = vst [vmem:[%s210] ss:$2 sm:$0xff] %v187
    %s212 = scalar_lea.vmem [#allocation1], 16
    %213 = vst [vmem:[%s212] ss:$2 sm:$0xff] %v188
    %s214 = scalar_lea.vmem [#allocation1], 17
    %215 = vst [vmem:[%s214] ss:$2 sm:$0xff] %v189
    %s216 = scalar_lea.vmem [#allocation1], 32
    %217 = vst [vmem:[%s216] ss:$2 sm:$0xff] %v190
    %s218 = scalar_lea.vmem [#allocation1], 33
    %219 = vst [vmem:[%s218] ss:$2 sm:$0xff] %v191
    %s220 = scalar_lea.vmem [#allocation1], 48
    %221 = vst [vmem:[%s220] ss:$2 sm:$0xff] %v192
    %s222 = scalar_lea.vmem [#allocation1], 49
    %223 = vst [vmem:[%s222] ss:$2 sm:$0xff] %v193
    %v224 = vld.sshfl [vmem:[#allocation1] sm:$0xff pattern:$0x75316420]
    %v225 = vld.sshfl [vmem:[#allocation1 + $0x10] sm:$0xff pattern:$0x75316420]
    %v226 = vld.sshfl [vmem:[#allocation1 + $0x20] sm:$0xff pattern:$0x75316420]
    %v227 = vld.sshfl [vmem:[#allocation1 + $0x30] sm:$0xff pattern:$0x75316420]
    %v228 = vsel %vm83, %v224, 0
    %v230 = vsel %vm83, %v225, 0
    %v232 = vsel %vm83, %v226, 0
    %v234 = vsel %vm83, %v227, 0
    %236 = vmatpush.msra.mxu0 0.0
    %237 = vmatpush.msra.mxu0 0.0
    %238 = vmatpush.msra.mxu0 0.0
    %239 = vmatpush.msra.mxu0 0.0
    %240 = vmatpush.msra.mxu0 0.0
    %241 = vmatpush.msra.mxu0 0.0
    %242 = vmatpush.msra.mxu0 0.0
    %243 = vmatpush.msra.mxu0 0.0
    %244 = vmatpush.msra.mxu0 0.0
    %245 = vmatpush.msra.mxu0 0.0
    %246 = vmatpush.msra.mxu0 %v200
    %247 = vmatpush.msra.mxu0 %v199
    %248 = vmatpush.msra.mxu0 %v198
    %249 = vmatpush.msra.mxu0 %v197
    %250 = vmatpush.msra.mxu0 %v196
    %251 = vmatpush.msra.mxu0 %v195
    %252 = vmatmul.f32.gmra.mxu0 %v228
    %v253 = vpop.f32.mrf.mxu0
    %v254 = vadd.f32 0.0, %v253
    %255 = vmatmul.f32.gmra.mxu0 %v230
    %v256 = vpop.f32.mrf.mxu0
    %v257 = vadd.f32 0.0, %v256
    %258 = vmatmul.f32.gmra.mxu0 %v232
    %v259 = vpop.f32.mrf.mxu0
    %v260 = vadd.f32 0.0, %v259
    %261 = vmatmul.f32.gmra.mxu0 %v234
    %v262 = vpop.f32.mrf.mxu0
    %v263 = vadd.f32 0.0, %v262
    %264 = vdwg.mxu0
    %v265 = vadd.f32 %v174, %v254
    %v266 = vadd.f32 %v177, %v257
    %v267 = vadd.f32 %v180, %v260
    %v268 = vadd.f32 %v183, %v263
    %v269 = vld [vmem:[%s185 + $0x1] sm:$0xf]
    %v270 = vld [vmem:[%s185 + $0x9] sm:$0xf]
    %v271 = vld [vmem:[%s185 + $0x11] sm:$0xf]
    %v272 = vld [vmem:[%s185 + $0x19] sm:$0xf]
    %v273 = vld [vmem:[%s185 + $0x29] sm:$0xf]
    %v274 = vld [vmem:[%s185 + $0x31] sm:$0xf]
    %v275 = vld [vmem:[%s185 + $0x39] sm:$0xf]
    %v276 = vld [vmem:[%s185 + $0x41] sm:$0xf]
    %s277 = scalar_lea.vmem %s1, 144
    %v278 = vld [vmem:[%s277] sm:$0xff]
    %v279 = vld [vmem:[%s277 + $0x8] sm:$0xff]
    %v280 = vld [vmem:[%s277 + $0x10] sm:$0xff]
    %v281 = vld [vmem:[%s277 + $0x18] sm:$0xff]
    %v282 = vld [vmem:[%s277 + $0x20] sm:$0xff]
    %v283 = vld [vmem:[%s277 + $0x28] sm:$0xff]
    %292 = vst [vmem:[#allocation1] ss:$2 sm:$0xff] %v269
    %s293 = scalar_lea.vmem [#allocation1], 1
    %294 = vst [vmem:[%s293] ss:$2 sm:$0xff] %v270
    %s295 = scalar_lea.vmem [#allocation1], 16
    %296 = vst [vmem:[%s295] ss:$2 sm:$0xff] %v271
    %s297 = scalar_lea.vmem [#allocation1], 17
    %298 = vst [vmem:[%s297] ss:$2 sm:$0xff] %v272
    %s299 = scalar_lea.vmem [#allocation1], 32
    %300 = vst [vmem:[%s299] ss:$2 sm:$0xff] %v273
    %s301 = scalar_lea.vmem [#allocation1], 33
    %302 = vst [vmem:[%s301] ss:$2 sm:$0xff] %v274
    %s303 = scalar_lea.vmem [#allocation1], 48
    %304 = vst [vmem:[%s303] ss:$2 sm:$0xff] %v275
    %s305 = scalar_lea.vmem [#allocation1], 49
    %306 = vst [vmem:[%s305] ss:$2 sm:$0xff] %v276
    %v307 = vld.sshfl [vmem:[#allocation1] sm:$0xff pattern:$0x75316420]
    %v308 = vld.sshfl [vmem:[#allocation1 + $0x10] sm:$0xff pattern:$0x75316420]
    %v309 = vld.sshfl [vmem:[#allocation1 + $0x20] sm:$0xff pattern:$0x75316420]
    %v310 = vld.sshfl [vmem:[#allocation1 + $0x30] sm:$0xff pattern:$0x75316420]
    %v311 = vsel %vm83, %v307, 0
    %v313 = vsel %vm83, %v308, 0
    %v315 = vsel %vm83, %v309, 0
    %v317 = vsel %vm83, %v310, 0
    %319 = vmatpush.msra.mxu0 0.0
    %320 = vmatpush.msra.mxu0 0.0
    %321 = vmatpush.msra.mxu0 0.0
    %322 = vmatpush.msra.mxu0 0.0
    %323 = vmatpush.msra.mxu0 0.0
    %324 = vmatpush.msra.mxu0 0.0
    %325 = vmatpush.msra.mxu0 0.0
    %326 = vmatpush.msra.mxu0 0.0
    %327 = vmatpush.msra.mxu0 0.0
    %328 = vmatpush.msra.mxu0 0.0
    %329 = vmatpush.msra.mxu0 %v283
    %330 = vmatpush.msra.mxu0 %v282
    %331 = vmatpush.msra.mxu0 %v281
    %332 = vmatpush.msra.mxu0 %v280
    %333 = vmatpush.msra.mxu0 %v279
    %334 = vmatpush.msra.mxu0 %v278
    %335 = vmatmul.f32.gmra.mxu0 %v311
    %v336 = vpop.f32.mrf.mxu0
    %v337 = vadd.f32 0.0, %v336
    %338 = vmatmul.f32.gmra.mxu0 %v313
    %v339 = vpop.f32.mrf.mxu0
    %v340 = vadd.f32 0.0, %v339
    %341 = vmatmul.f32.gmra.mxu0 %v315
    %v342 = vpop.f32.mrf.mxu0
    %v343 = vadd.f32 0.0, %v342
    %344 = vmatmul.f32.gmra.mxu0 %v317
    %v345 = vpop.f32.mrf.mxu0
    %v346 = vadd.f32 0.0, %v345
    %347 = vdwg.mxu0
    %v348 = vadd.f32 %v265, %v337
    %v349 = vadd.f32 %v266, %v340
    %v350 = vadd.f32 %v267, %v343
    %v351 = vadd.f32 %v268, %v346
    %v352 = vld [vmem:[%s3] sm:$0x1]
    %v354 = vperm.slane %v352, 0
    %v356 = vmul.f32 %v348, %v354
    %v357 = vmul.f32 %v349, %v354
    %v358 = vmul.f32 %v350, %v354
    %v359 = vmul.f32 %v351, %v354
    %v360 = vld [vmem:[%s4] sm:$0x1]
    %v362 = vperm.slane %v360, 0
    %v364 = vadd.f32 %v356, %v362
    %v365 = vadd.f32 %v357, %v362
    %v366 = vadd.f32 %v358, %v362
    %v367 = vadd.f32 %v359, %v362
    %v368 = vmax.f32 %v364, 0.0
    %v369 = vmax.f32 %v365, 0.0
    %v370 = vmax.f32 %v366, 0.0
    %v371 = vmax.f32 %v367, 0.0
    %vm372 = vcmask 520192
    %373 = vst.msk [vmem:[#allocation2] sm:$0x1f] %vm372, 0.0
    %374 = vst.msk [vmem:[#allocation2 + $0x8] sm:$0x1f] %vm372, 0.0
    %375 = vst.msk [vmem:[#allocation2 + $0x10] sm:$0x1f] %vm372, 0.0
    %376 = vst.msk [vmem:[#allocation2 + $0x18] sm:$0x1f] %vm372, 0.0
    %377 = vst.msk [vmem:[#allocation2 + $0x20] sm:$0x1f] %vm372, 0.0
    %378 = vst.msk [vmem:[#allocation2 + $0x28] sm:$0x1f] %vm372, 0.0
    %379 = vst.msk [vmem:[#allocation2 + $0x30] sm:$0x1f] %vm372, 0.0
    %380 = vst.msk [vmem:[#allocation2 + $0x38] sm:$0x1f] %vm372, 0.0
    %381 = vst.msk [vmem:[#allocation2 + $0x40] sm:$0x1f] %vm372, 0.0
    %382 = vst.msk [vmem:[#allocation2 + $0x48] sm:$0x1f] %vm372, 0.0
    %v387 = vrot.slane %v368, 4
    %v388 = vrot.slane %v369, 4
    %v389 = vrot.slane %v370, 4
    %v390 = vrot.slane %v371, 4
    %s395 = scalar_lea.vmem [#allocation2], 8
    %vm396 = vcmask 519168
    %397 = vst.msk [vmem:[%s395 + $0x1] sm:$0xf] %vm396, %v368
    %398 = vst.msk [vmem:[%s395 + $0x9] sm:$0xf] %vm396, %v387
    %399 = vst.msk [vmem:[%s395 + $0x11] sm:$0xf] %vm396, %v369
    %400 = vst.msk [vmem:[%s395 + $0x19] sm:$0xf] %vm396, %v388
    %401 = vst.msk [vmem:[%s395 + $0x29] sm:$0xf] %vm396, %v370
    %402 = vst.msk [vmem:[%s395 + $0x31] sm:$0xf] %vm396, %v389
    %403 = vst.msk [vmem:[%s395 + $0x39] sm:$0xf] %vm396, %v371
    %404 = vst.msk [vmem:[%s395 + $0x41] sm:$0xf] %vm396, %v390
    %v405 = vld [vmem:[#allocation2] sm:$0xf]
    %v406 = vld [vmem:[#allocation2 + $0x8] sm:$0xf]
    %v407 = vld [vmem:[#allocation2 + $0x10] sm:$0xf]
    %v408 = vld [vmem:[#allocation2 + $0x18] sm:$0xf]
    %v409 = vld [vmem:[#allocation2 + $0x28] sm:$0xf]
    %v410 = vld [vmem:[#allocation2 + $0x30] sm:$0xf]
    %v411 = vld [vmem:[#allocation2 + $0x38] sm:$0xf]
    %v412 = vld [vmem:[#allocation2 + $0x40] sm:$0xf]
    %v413 = vld [vmem:[%s2] sm:$0xff]
    %v414 = vld [vmem:[%s2 + $0x8] sm:$0xff]
    %v415 = vld [vmem:[%s2 + $0x10] sm:$0xff]
    %v416 = vld [vmem:[%s2 + $0x18] sm:$0xff]
    %v417 = vld [vmem:[%s2 + $0x20] sm:$0xff]
    %v418 = vld [vmem:[%s2 + $0x28] sm:$0xff]
    %v419 = vld [vmem:[%s2 + $0x30] sm:$0xff]
    %v420 = vld [vmem:[%s2 + $0x38] sm:$0xff]
    %v421 = vld [vmem:[#allocation2 + $0x1] sm:$0xf]
    %v422 = vld [vmem:[#allocation2 + $0x9] sm:$0xf]
    %v423 = vld [vmem:[#allocation2 + $0x11] sm:$0xf]
    %v424 = vld [vmem:[#allocation2 + $0x19] sm:$0xf]
    %v425 = vld [vmem:[#allocation2 + $0x29] sm:$0xf]
    %v426 = vld [vmem:[#allocation2 + $0x31] sm:$0xf]
    %v427 = vld [vmem:[#allocation2 + $0x39] sm:$0xf]
    %v428 = vld [vmem:[#allocation2 + $0x41] sm:$0xf]
    %s429 = scalar_lea.vmem %s2, 64
    %v430 = vld [vmem:[%s429] sm:$0xff]
    %v431 = vld [vmem:[%s429 + $0x8] sm:$0xff]
    %v432 = vld [vmem:[%s429 + $0x10] sm:$0xff]
    %v433 = vld [vmem:[%s429 + $0x18] sm:$0xff]
    %v434 = vld [vmem:[%s429 + $0x20] sm:$0xff]
    %v435 = vld [vmem:[%s429 + $0x28] sm:$0xff]
    %v436 = vld [vmem:[%s429 + $0x30] sm:$0xff]
    %v437 = vld [vmem:[%s429 + $0x38] sm:$0xff]
    %446 = vst [vmem:[#allocation1] ss:$2 sm:$0xff] %v421
    %s447 = scalar_lea.vmem [#allocation1], 1
    %448 = vst [vmem:[%s447] ss:$2 sm:$0xff] %v422
    %s449 = scalar_lea.vmem [#allocation1], 16
    %450 = vst [vmem:[%s449] ss:$2 sm:$0xff] %v423
    %s451 = scalar_lea.vmem [#allocation1], 17
    %452 = vst [vmem:[%s451] ss:$2 sm:$0xff] %v424
    %s453 = scalar_lea.vmem [#allocation1], 32
    %454 = vst [vmem:[%s453] ss:$2 sm:$0xff] %v425
    %s455 = scalar_lea.vmem [#allocation1], 33
    %456 = vst [vmem:[%s455] ss:$2 sm:$0xff] %v426
    %s457 = scalar_lea.vmem [#allocation1], 48
    %458 = vst [vmem:[%s457] ss:$2 sm:$0xff] %v427
    %s459 = scalar_lea.vmem [#allocation1], 49
    %460 = vst [vmem:[%s459] ss:$2 sm:$0xff] %v428
    %v461 = vld.sshfl [vmem:[#allocation1] sm:$0xff pattern:$0x75316420]
    %v462 = vld.sshfl [vmem:[#allocation1 + $0x10] sm:$0xff pattern:$0x75316420]
    %v463 = vld.sshfl [vmem:[#allocation1 + $0x20] sm:$0xff pattern:$0x75316420]
    %v464 = vld.sshfl [vmem:[#allocation1 + $0x30] sm:$0xff pattern:$0x75316420]
    %vm465 = vcmask 523264
    %v466 = vsel %vm465, %v461, 0
    %v468 = vsel %vm465, %v462, 0
    %v470 = vsel %vm465, %v463, 0
    %v472 = vsel %vm465, %v464, 0
    %474 = vmatpush.msra.mxu0 0.0
    %475 = vmatpush.msra.mxu0 0.0
    %476 = vmatpush.msra.mxu0 0.0
    %477 = vmatpush.msra.mxu0 0.0
    %478 = vmatpush.msra.mxu0 0.0
    %479 = vmatpush.msra.mxu0 0.0
    %480 = vmatpush.msra.mxu0 0.0
    %481 = vmatpush.msra.mxu0 0.0
    %482 = vmatpush.msra.mxu0 %v437
    %483 = vmatpush.msra.mxu0 %v436
    %484 = vmatpush.msra.mxu0 %v435
    %485 = vmatpush.msra.mxu0 %v434
    %486 = vmatpush.msra.mxu0 %v433
    %487 = vmatpush.msra.mxu0 %v432
    %488 = vmatpush.msra.mxu0 %v431
    %489 = vmatpush.msra.mxu0 %v430
    %490 = vmatmul.f32.gmra.mxu0 %v466
    %v491 = vpop.f32.mrf.mxu0
    %v492 = vadd.f32 0.0, %v491
    %493 = vmatmul.f32.gmra.mxu0 %v468
    %v494 = vpop.f32.mrf.mxu0
    %v495 = vadd.f32 0.0, %v494
    %496 = vmatmul.f32.gmra.mxu0 %v470
    %v497 = vpop.f32.mrf.mxu0
    %v498 = vadd.f32 0.0, %v497
    %499 = vmatmul.f32.gmra.mxu0 %v472
    %v500 = vpop.f32.mrf.mxu0
    %v501 = vadd.f32 0.0, %v500
    %502 = vdwg.mxu0
    %511 = vst [vmem:[#allocation1] ss:$2 sm:$0xff] %v405
    %s512 = scalar_lea.vmem [#allocation1], 1
    %513 = vst [vmem:[%s512] ss:$2 sm:$0xff] %v406
    %s514 = scalar_lea.vmem [#allocation1], 16
    %515 = vst [vmem:[%s514] ss:$2 sm:$0xff] %v407
    %s516 = scalar_lea.vmem [#allocation1], 17
    %517 = vst [vmem:[%s516] ss:$2 sm:$0xff] %v408
    %s518 = scalar_lea.vmem [#allocation1], 32
    %519 = vst [vmem:[%s518] ss:$2 sm:$0xff] %v409
    %s520 = scalar_lea.vmem [#allocation1], 33
    %521 = vst [vmem:[%s520] ss:$2 sm:$0xff] %v410
    %s522 = scalar_lea.vmem [#allocation1], 48
    %523 = vst [vmem:[%s522] ss:$2 sm:$0xff] %v411
    %s524 = scalar_lea.vmem [#allocation1], 49
    %525 = vst [vmem:[%s524] ss:$2 sm:$0xff] %v412
    %v526 = vld.sshfl [vmem:[#allocation1] sm:$0xff pattern:$0x75316420]
    %v527 = vld.sshfl [vmem:[#allocation1 + $0x10] sm:$0xff pattern:$0x75316420]
    %v528 = vld.sshfl [vmem:[#allocation1 + $0x20] sm:$0xff pattern:$0x75316420]
    %v529 = vld.sshfl [vmem:[#allocation1 + $0x30] sm:$0xff pattern:$0x75316420]
    %v530 = vsel %vm465, %v526, 0
    %v532 = vsel %vm465, %v527, 0
    %v534 = vsel %vm465, %v528, 0
    %v536 = vsel %vm465, %v529, 0
    %538 = vmatpush.msra.mxu0 0.0
    %539 = vmatpush.msra.mxu0 0.0
    %540 = vmatpush.msra.mxu0 0.0
    %541 = vmatpush.msra.mxu0 0.0
    %542 = vmatpush.msra.mxu0 0.0
    %543 = vmatpush.msra.mxu0 0.0
    %544 = vmatpush.msra.mxu0 0.0
    %545 = vmatpush.msra.mxu0 0.0
    %546 = vmatpush.msra.mxu0 %v420
    %547 = vmatpush.msra.mxu0 %v419
    %548 = vmatpush.msra.mxu0 %v418
    %549 = vmatpush.msra.mxu0 %v417
    %550 = vmatpush.msra.mxu0 %v416
    %551 = vmatpush.msra.mxu0 %v415
    %552 = vmatpush.msra.mxu0 %v414
    %553 = vmatpush.msra.mxu0 %v413
    %554 = vmatmul.f32.gmra.mxu0 %v530
    %v555 = vpop.f32.mrf.mxu0
    %v556 = vadd.f32 %v492, %v555
    %557 = vmatmul.f32.gmra.mxu0 %v532
    %v558 = vpop.f32.mrf.mxu0
    %v559 = vadd.f32 %v495, %v558
    %560 = vmatmul.f32.gmra.mxu0 %v534
    %v561 = vpop.f32.mrf.mxu0
    %v562 = vadd.f32 %v498, %v561
    %563 = vmatmul.f32.gmra.mxu0 %v536
    %v564 = vpop.f32.mrf.mxu0
    %v565 = vadd.f32 %v501, %v564
    %566 = vdwg.mxu0
    %v567 = vld [vmem:[%s395] sm:$0xf]
    %v568 = vld [vmem:[%s395 + $0x8] sm:$0xf]
    %v569 = vld [vmem:[%s395 + $0x10] sm:$0xf]
    %v570 = vld [vmem:[%s395 + $0x18] sm:$0xf]
    %v571 = vld [vmem:[%s395 + $0x28] sm:$0xf]
    %v572 = vld [vmem:[%s395 + $0x30] sm:$0xf]
    %v573 = vld [vmem:[%s395 + $0x38] sm:$0xf]
    %v574 = vld [vmem:[%s395 + $0x40] sm:$0xf]
    %s575 = scalar_lea.vmem %s2, 128
    %v576 = vld [vmem:[%s575] sm:$0xff]
    %v577 = vld [vmem:[%s575 + $0x8] sm:$0xff]
    %v578 = vld [vmem:[%s575 + $0x10] sm:$0xff]
    %v579 = vld [vmem:[%s575 + $0x18] sm:$0xff]
    %v580 = vld [vmem:[%s575 + $0x20] sm:$0xff]
    %v581 = vld [vmem:[%s575 + $0x28] sm:$0xff]
    %v582 = vld [vmem:[%s575 + $0x30] sm:$0xff]
    %v583 = vld [vmem:[%s575 + $0x38] sm:$0xff]
    %592 = vst [vmem:[#allocation1] ss:$2 sm:$0xff] %v567
    %s593 = scalar_lea.vmem [#allocation1], 1
    %594 = vst [vmem:[%s593] ss:$2 sm:$0xff] %v568
    %s595 = scalar_lea.vmem [#allocation1], 16
    %596 = vst [vmem:[%s595] ss:$2 sm:$0xff] %v569
    %s597 = scalar_lea.vmem [#allocation1], 17
    %598 = vst [vmem:[%s597] ss:$2 sm:$0xff] %v570
    %s599 = scalar_lea.vmem [#allocation1], 32
    %600 = vst [vmem:[%s599] ss:$2 sm:$0xff] %v571
    %s601 = scalar_lea.vmem [#allocation1], 33
    %602 = vst [vmem:[%s601] ss:$2 sm:$0xff] %v572
    %s603 = scalar_lea.vmem [#allocation1], 48
    %604 = vst [vmem:[%s603] ss:$2 sm:$0xff] %v573
    %s605 = scalar_lea.vmem [#allocation1], 49
    %606 = vst [vmem:[%s605] ss:$2 sm:$0xff] %v574
    %v607 = vld.sshfl [vmem:[#allocation1] sm:$0xff pattern:$0x75316420]
    %v608 = vld.sshfl [vmem:[#allocation1 + $0x10] sm:$0xff pattern:$0x75316420]
    %v609 = vld.sshfl [vmem:[#allocation1 + $0x20] sm:$0xff pattern:$0x75316420]
    %v610 = vld.sshfl [vmem:[#allocation1 + $0x30] sm:$0xff pattern:$0x75316420]
    %v611 = vsel %vm465, %v607, 0
    %v613 = vsel %vm465, %v608, 0
    %v615 = vsel %vm465, %v609, 0
    %v617 = vsel %vm465, %v610, 0
    %619 = vmatpush.msra.mxu0 0.0
    %620 = vmatpush.msra.mxu0 0.0
    %621 = vmatpush.msra.mxu0 0.0
    %622 = vmatpush.msra.mxu0 0.0
    %623 = vmatpush.msra.mxu0 0.0
    %624 = vmatpush.msra.mxu0 0.0
    %625 = vmatpush.msra.mxu0 0.0
    %626 = vmatpush.msra.mxu0 0.0
    %627 = vmatpush.msra.mxu0 %v583
    %628 = vmatpush.msra.mxu0 %v582
    %629 = vmatpush.msra.mxu0 %v581
    %630 = vmatpush.msra.mxu0 %v580
    %631 = vmatpush.msra.mxu0 %v579
    %632 = vmatpush.msra.mxu0 %v578
    %633 = vmatpush.msra.mxu0 %v577
    %634 = vmatpush.msra.mxu0 %v576
    %635 = vmatmul.f32.gmra.mxu0 %v611
    %v636 = vpop.f32.mrf.mxu0
    %v637 = vadd.f32 0.0, %v636
    %638 = vmatmul.f32.gmra.mxu0 %v613
    %v639 = vpop.f32.mrf.mxu0
    %v640 = vadd.f32 0.0, %v639
    %641 = vmatmul.f32.gmra.mxu0 %v615
    %v642 = vpop.f32.mrf.mxu0
    %v643 = vadd.f32 0.0, %v642
    %644 = vmatmul.f32.gmra.mxu0 %v617
    %v645 = vpop.f32.mrf.mxu0
    %v646 = vadd.f32 0.0, %v645
    %647 = vdwg.mxu0
    %v648 = vadd.f32 %v556, %v637
    %v649 = vadd.f32 %v559, %v640
    %v650 = vadd.f32 %v562, %v643
    %v651 = vadd.f32 %v565, %v646
    %v652 = vld [vmem:[%s395 + $0x1] sm:$0xf]
    %v653 = vld [vmem:[%s395 + $0x9] sm:$0xf]
    %v654 = vld [vmem:[%s395 + $0x11] sm:$0xf]
    %v655 = vld [vmem:[%s395 + $0x19] sm:$0xf]
    %v656 = vld [vmem:[%s395 + $0x29] sm:$0xf]
    %v657 = vld [vmem:[%s395 + $0x31] sm:$0xf]
    %v658 = vld [vmem:[%s395 + $0x39] sm:$0xf]
    %v659 = vld [vmem:[%s395 + $0x41] sm:$0xf]
    %s660 = scalar_lea.vmem %s2, 192
    %v661 = vld [vmem:[%s660] sm:$0xff]
    %v662 = vld [vmem:[%s660 + $0x8] sm:$0xff]
    %v663 = vld [vmem:[%s660 + $0x10] sm:$0xff]
    %v664 = vld [vmem:[%s660 + $0x18] sm:$0xff]
    %v665 = vld [vmem:[%s660 + $0x20] sm:$0xff]
    %v666 = vld [vmem:[%s660 + $0x28] sm:$0xff]
    %v667 = vld [vmem:[%s660 + $0x30] sm:$0xff]
    %v668 = vld [vmem:[%s660 + $0x38] sm:$0xff]
    %677 = vst [vmem:[#allocation1] ss:$2 sm:$0xff] %v652
    %s678 = scalar_lea.vmem [#allocation1], 1
    %679 = vst [vmem:[%s678] ss:$2 sm:$0xff] %v653
    %s680 = scalar_lea.vmem [#allocation1], 16
    %681 = vst [vmem:[%s680] ss:$2 sm:$0xff] %v654
    %s682 = scalar_lea.vmem [#allocation1], 17
    %683 = vst [vmem:[%s682] ss:$2 sm:$0xff] %v655
    %s684 = scalar_lea.vmem [#allocation1], 32
    %685 = vst [vmem:[%s684] ss:$2 sm:$0xff] %v656
    %s686 = scalar_lea.vmem [#allocation1], 33
    %687 = vst [vmem:[%s686] ss:$2 sm:$0xff] %v657
    %s688 = scalar_lea.vmem [#allocation1], 48
    %689 = vst [vmem:[%s688] ss:$2 sm:$0xff] %v658
    %s690 = scalar_lea.vmem [#allocation1], 49
    %691 = vst [vmem:[%s690] ss:$2 sm:$0xff] %v659
    %v692 = vld.sshfl [vmem:[#allocation1] sm:$0xff pattern:$0x75316420]
    %v693 = vld.sshfl [vmem:[#allocation1 + $0x10] sm:$0xff pattern:$0x75316420]
    %v694 = vld.sshfl [vmem:[#allocation1 + $0x20] sm:$0xff pattern:$0x75316420]
    %v695 = vld.sshfl [vmem:[#allocation1 + $0x30] sm:$0xff pattern:$0x75316420]
    %v696 = vsel %vm465, %v692, 0
    %v698 = vsel %vm465, %v693, 0
    %v700 = vsel %vm465, %v694, 0
    %v702 = vsel %vm465, %v695, 0
    %704 = vmatpush.msra.mxu0 0.0
    %705 = vmatpush.msra.mxu0 0.0
    %706 = vmatpush.msra.mxu0 0.0
    %707 = vmatpush.msra.mxu0 0.0
    %708 = vmatpush.msra.mxu0 0.0
    %709 = vmatpush.msra.mxu0 0.0
    %710 = vmatpush.msra.mxu0 0.0
    %711 = vmatpush.msra.mxu0 0.0
    %712 = vmatpush.msra.mxu0 %v668
    %713 = vmatpush.msra.mxu0 %v667
    %714 = vmatpush.msra.mxu0 %v666
    %715 = vmatpush.msra.mxu0 %v665
    %716 = vmatpush.msra.mxu0 %v664
    %717 = vmatpush.msra.mxu0 %v663
    %718 = vmatpush.msra.mxu0 %v662
    %719 = vmatpush.msra.mxu0 %v661
    %720 = vmatmul.f32.gmra.mxu0 %v696
    %v721 = vpop.f32.mrf.mxu0
    %v722 = vadd.f32 0.0, %v721
    %723 = vmatmul.f32.gmra.mxu0 %v698
    %v724 = vpop.f32.mrf.mxu0
    %v725 = vadd.f32 0.0, %v724
    %726 = vmatmul.f32.gmra.mxu0 %v700
    %v727 = vpop.f32.mrf.mxu0
    %v728 = vadd.f32 0.0, %v727
    %729 = vmatmul.f32.gmra.mxu0 %v702
    %v730 = vpop.f32.mrf.mxu0
    %v731 = vadd.f32 0.0, %v730
    %732 = vdwg.mxu0
    %v733 = vadd.f32 %v648, %v722
    %v734 = vadd.f32 %v649, %v725
    %v735 = vadd.f32 %v650, %v728
    %v736 = vadd.f32 %v651, %v731
    %v737 = vld [vmem:[%s5] sm:$0x1]
    %v739 = vperm.slane %v737, 0
    %v741 = vmul.f32 %v733, %v739
    %v742 = vmul.f32 %v734, %v739
    %v743 = vmul.f32 %v735, %v739
    %v744 = vmul.f32 %v736, %v739
    %v745 = vld [vmem:[%s6] sm:$0x1]
    %v747 = vperm.slane %v745, 0
    %v749 = vadd.f32 %v741, %v747
    %v750 = vadd.f32 %v742, %v747
    %v751 = vadd.f32 %v743, %v747
    %v752 = vadd.f32 %v744, %v747
    %vm753 = vcmask 261120
    %754 = vst.msk [vmem:[#allocation3] sm:$0xff] %vm753, %v749
    %755 = vst.msk [vmem:[#allocation3 + $0x8] sm:$0xff] %vm753, %v750
    %756 = vst.msk [vmem:[#allocation3 + $0x10] sm:$0xff] %vm753, %v751
    %757 = vst.msk [vmem:[#allocation3 + $0x18] sm:$0xff] %vm753, %v752
    // Predicated region
    $region30: #{stem0_imagenet_forward.1} parent=1 // pred_check
      _
    $region31: #{stem0_imagenet_forward.1} parent=1 // pred_check_branch
      %759 = sbr.rel (0) target = $region33
    $region32: #{stem0_imagenet_forward.1} parent=1 // pred_region
      %761 = vsyncadd [#allocation4], 0
      %s762 = sshll.u32 [#allocation3], 4
      %s763 = int_to_ptr.vmem [resolvable:$true] %s762
      %s764 = sshll.u32 %s7, 4
      %s765 = int_to_ptr.hbm [resolvable:$true] %s764
      %770 = dma.vmem_to_hbm [thread:$0]  %s763, 512, %s765, [#allocation4], 128, 128, 8
    $region33: #{stem0_imagenet_forward.1} parent=1 // pred_fallthru
      _
    // Predicated region
    $region34: #{stem0_imagenet_forward.1} parent=1 // pred_check
      _
    $region35: #{stem0_imagenet_forward.1} parent=1 // pred_check_branch
      %772 = sbr.rel (0) target = $region37
    $region36: #{stem0_imagenet_forward.1} parent=1 // pred_region
      %774 = dma.done [#allocation4], 512
    $region37: #{stem0_imagenet_forward.1} parent=1 // pred_fallthru
      _
    %775 = vsyncpa [#allocation4], 1

</llo_original>
